<compile_context>
chip_gen: v7x
topology: tpu7x:2x2x1
jax: 0.10.0
libtpu: 0.0.40
codegen_flags: <defaults>
</compile_context>

<pallas_src>
import functools

import jax
import jax.numpy as jnp
from jax.experimental import pallas as pl
from jax.experimental.pallas import tpu as pltpu


# --------------------------------------------------------------------------
# Primary path: direct HBM -> HBM DMA copy (no VMEM staging, no padding).
# --------------------------------------------------------------------------
def _dma_copy_kernel(x_hbm, o_hbm, sems, *, n_chunks, chunk):
    """Copy x_hbm -> o_hbm with `n_chunks` outstanding DMAs along axis 0."""
    if n_chunks == 1:
        cp = pltpu.make_async_copy(x_hbm, o_hbm, sems.at[0])
        cp.start()
        cp.wait()
    else:
        copies = []
        for i in range(n_chunks):          # static Python loop (n_chunks is static)
            sl = pl.ds(i * chunk, chunk)
            cp = pltpu.make_async_copy(x_hbm.at[sl], o_hbm.at[sl], sems.at[i])
            cp.start()
            copies.append(cp)
        for cp in copies:
            cp.wait()


def _num_chunks(lead):
    # 2-4 outstanding DMAs keeps the DMA engines busy; 1 is fine for tiny inputs.
    for c in (4, 2):
        if lead >= c and lead % c == 0:
            return c
    return 1


def _dma_copy(x):
    lead = x.shape[0] if x.ndim >= 1 else 1
    n_chunks = _num_chunks(lead)
    chunk = lead // n_chunks
    itemsize = jnp.dtype(x.dtype).itemsize
    return pl.pallas_call(
        functools.partial(_dma_copy_kernel, n_chunks=n_chunks, chunk=chunk),
        out_shape=jax.ShapeDtypeStruct(x.shape, x.dtype),
        in_specs=[pl.BlockSpec(memory_space=pl.ANY)],   # raw HBM ref, no auto-DMA
        out_specs=pl.BlockSpec(memory_space=pl.ANY),    # raw HBM ref, written via DMA
        scratch_shapes=[pltpu.SemaphoreType.DMA((n_chunks,))],
        cost_estimate=pl.CostEstimate(
            flops=0, transcendentals=0,
            bytes_accessed=2 * x.size * itemsize,
        ),
    )(x)


# --------------------------------------------------------------------------
# Fallback path: tiled, lane-dense VMEM copy (known-good; used only if the
# direct HBM->HBM DMA fails to lower on the local toolchain).
# --------------------------------------------------------------------------
_LANE = 512        # full-width unmasked vst
_TILE_ROWS = 1024  # 1024 x 512 f32 = 2 MiB tile; double-buffered in+out = 8 MiB,
                   # safe under the 16 MiB v5e scoped-VMEM default on every gen.


def _vmem_copy_kernel(x_ref, o_ref):
    o_ref[...] = x_ref[...]


def _tiled_copy_fallback(x):
    orig_shape, dtype, total = x.shape, x.dtype, x.size
    rows = pl.cdiv(total, _LANE)
    # Round rows to 32: covers sublane packing for f32 (8), bf16 (16), int8 (32).
    tile_r = min(_TILE_ROWS, ((rows + 31) // 32) * 32)
    padded_rows = ((rows + tile_r - 1) // tile_r) * tile_r
    flat = x.reshape(-1)
    pad = padded_rows * _LANE - total
    if pad:
        flat = jnp.pad(flat, (0, pad))
    x2d = flat.reshape(padded_rows, _LANE)
    out2d = pl.pallas_call(
        _vmem_copy_kernel,
        out_shape=jax.ShapeDtypeStruct((padded_rows, _LANE), dtype),
        grid=(padded_rows // tile_r,),
        in_specs=[pl.BlockSpec((tile_r, _LANE), lambda i: (i, 0))],
        out_specs=pl.BlockSpec((tile_r, _LANE), lambda i: (i, 0)),
        compiler_params=pltpu.CompilerParams(dimension_semantics=("parallel",)),
    )(x2d)
    return out2d.reshape(-1)[:total].reshape(orig_shape)


# --------------------------------------------------------------------------
# Module-level wrapper.
# --------------------------------------------------------------------------
def get_features_pallas(x, *, materialize=True):
    """Identity / feature-capture forward.

    materialize=False is the production / zero-cost path (`return x, x`:
    no kernel can beat not copying).  materialize=True expresses the
    pass-through as a Pallas HBM->HBM DMA copy at the HBM roofline.
    """
    if not materialize or x.size == 0 or x.ndim == 0:
        return x, x
    try:
        out = _dma_copy(x)           # eager dispatch: lowering errors surface here
    except Exception:                # pragma: no cover - safety net only
        out = _tiled_copy_fallback(x)
    # `self.features = x` in the PyTorch module -> captured as a second return.
    return out, out


class GetFeatures:
    """Thin wrapper mirroring the PyTorch module's interface."""

    def __init__(self, materialize=True):
        self.features = None
        self.materialize = materialize

    def __call__(self, x):
        out, feats = get_features_pallas(x, materialize=self.materialize)
        self.features = feats
        return out


if __name__ == "__main__":
    key = jax.random.PRNGKey(0)
    x = jax.random.normal(key, (2, 4, 16, 16), dtype=jnp.float32)  # NCHW

    mod = GetFeatures(materialize=True)   # exercise the Pallas kernel
    y = mod(x)
    jax.block_until_ready(y)
    jax.block_until_ready(mod.features)

    assert y.shape == x.shape and y.dtype == x.dtype
    assert jnp.array_equal(y, x)
    assert jnp.array_equal(mod.features, x)

    print("KERNEL_OK")
</pallas_src>

<mosaic_0001>
module attributes {stable_mosaic.version = 11 : i64} {
  func.func @_dma_copy_kernel(%arg0: memref<2x4x16x16xf32, #tpu.memory_space<any>>, %arg1: memref<2x4x16x16xf32, #tpu.memory_space<any>>, %arg2: memref<2x!tpu.dma_semaphore, #tpu.memory_space<semaphore_mem>>) attributes {dimension_semantics = [], scalar_prefetch = 0 : i64, scratch_operands = 1 : i64, tpu.core_type = #tpu.core_type<tc>} {
    %c0_i32 = arith.constant 0 : i32
    %c0_i32_0 = arith.constant 0 : i32
    %c0_i32_1 = arith.constant 0 : i32
    %c0_i32_2 = arith.constant 0 : i32
    %c0_i32_3 = arith.constant 0 : i32
    %0 = tpu.memref_slice %arg0[%c0_i32_0, %c0_i32_1, %c0_i32_2, %c0_i32_3] : memref<2x4x16x16xf32, #tpu.memory_space<any>> -> memref<1x4x16x16xf32, #tpu.memory_space<any>>
    %c0_i32_4 = arith.constant 0 : i32
    %c0_i32_5 = arith.constant 0 : i32
    %c0_i32_6 = arith.constant 0 : i32
    %c0_i32_7 = arith.constant 0 : i32
    %1 = tpu.memref_slice %arg1[%c0_i32_4, %c0_i32_5, %c0_i32_6, %c0_i32_7] : memref<2x4x16x16xf32, #tpu.memory_space<any>> -> memref<1x4x16x16xf32, #tpu.memory_space<any>>
    %2 = tpu.memref_slice %arg2[%c0_i32] : memref<2x!tpu.dma_semaphore, #tpu.memory_space<semaphore_mem>> -> memref<1x!tpu.dma_semaphore, #tpu.memory_space<semaphore_mem>>
    %3 = tpu.memref_squeeze %2 : memref<1x!tpu.dma_semaphore, #tpu.memory_space<semaphore_mem>> -> memref<!tpu.dma_semaphore, #tpu.memory_space<semaphore_mem>>
    tpu.enqueue_dma source(%0 : memref<1x4x16x16xf32, #tpu.memory_space<any>>) target(%1 : memref<1x4x16x16xf32, #tpu.memory_space<any>>) target_semaphore(%3 : memref<!tpu.dma_semaphore, #tpu.memory_space<semaphore_mem>>)
    %c1_i32 = arith.constant 1 : i32
    %c1_i32_8 = arith.constant 1 : i32
    %c0_i32_9 = arith.constant 0 : i32
    %c0_i32_10 = arith.constant 0 : i32
    %c0_i32_11 = arith.constant 0 : i32
    %4 = tpu.memref_slice %arg0[%c1_i32_8, %c0_i32_9, %c0_i32_10, %c0_i32_11] : memref<2x4x16x16xf32, #tpu.memory_space<any>> -> memref<1x4x16x16xf32, #tpu.memory_space<any>>
    %c1_i32_12 = arith.constant 1 : i32
    %c0_i32_13 = arith.constant 0 : i32
    %c0_i32_14 = arith.constant 0 : i32
    %c0_i32_15 = arith.constant 0 : i32
    %5 = tpu.memref_slice %arg1[%c1_i32_12, %c0_i32_13, %c0_i32_14, %c0_i32_15] : memref<2x4x16x16xf32, #tpu.memory_space<any>> -> memref<1x4x16x16xf32, #tpu.memory_space<any>>
    %6 = tpu.memref_slice %arg2[%c1_i32] : memref<2x!tpu.dma_semaphore, #tpu.memory_space<semaphore_mem>> -> memref<1x!tpu.dma_semaphore, #tpu.memory_space<semaphore_mem>>
    %7 = tpu.memref_squeeze %6 : memref<1x!tpu.dma_semaphore, #tpu.memory_space<semaphore_mem>> -> memref<!tpu.dma_semaphore, #tpu.memory_space<semaphore_mem>>
    tpu.enqueue_dma source(%4 : memref<1x4x16x16xf32, #tpu.memory_space<any>>) target(%5 : memref<1x4x16x16xf32, #tpu.memory_space<any>>) target_semaphore(%7 : memref<!tpu.dma_semaphore, #tpu.memory_space<semaphore_mem>>)
    %c0_i32_16 = arith.constant 0 : i32
    %c0_i32_17 = arith.constant 0 : i32
    %c0_i32_18 = arith.constant 0 : i32
    %c0_i32_19 = arith.constant 0 : i32
    %c0_i32_20 = arith.constant 0 : i32
    %8 = tpu.memref_slice %arg0[%c0_i32_17, %c0_i32_18, %c0_i32_19, %c0_i32_20] : memref<2x4x16x16xf32, #tpu.memory_space<any>> -> memref<1x4x16x16xf32, #tpu.memory_space<any>>
    %c0_i32_21 = arith.constant 0 : i32
    %c0_i32_22 = arith.constant 0 : i32
    %c0_i32_23 = arith.constant 0 : i32
    %c0_i32_24 = arith.constant 0 : i32
    %9 = tpu.memref_slice %arg1[%c0_i32_21, %c0_i32_22, %c0_i32_23, %c0_i32_24] : memref<2x4x16x16xf32, #tpu.memory_space<any>> -> memref<1x4x16x16xf32, #tpu.memory_space<any>>
    %10 = tpu.memref_slice %arg2[%c0_i32_16] : memref<2x!tpu.dma_semaphore, #tpu.memory_space<semaphore_mem>> -> memref<1x!tpu.dma_semaphore, #tpu.memory_space<semaphore_mem>>
    %11 = tpu.memref_squeeze %10 : memref<1x!tpu.dma_semaphore, #tpu.memory_space<semaphore_mem>> -> memref<!tpu.dma_semaphore, #tpu.memory_space<semaphore_mem>>
    tpu.wait_dma2 semaphore(%11 : memref<!tpu.dma_semaphore, #tpu.memory_space<semaphore_mem>>) src(%8 : memref<1x4x16x16xf32, #tpu.memory_space<any>>) dst(%9 : memref<1x4x16x16xf32, #tpu.memory_space<any>>)
    %c1_i32_25 = arith.constant 1 : i32
    %c1_i32_26 = arith.constant 1 : i32
    %c0_i32_27 = arith.constant 0 : i32
    %c0_i32_28 = arith.constant 0 : i32
    %c0_i32_29 = arith.constant 0 : i32
    %12 = tpu.memref_slice %arg0[%c1_i32_26, %c0_i32_27, %c0_i32_28, %c0_i32_29] : memref<2x4x16x16xf32, #tpu.memory_space<any>> -> memref<1x4x16x16xf32, #tpu.memory_space<any>>
    %c1_i32_30 = arith.constant 1 : i32
    %c0_i32_31 = arith.constant 0 : i32
    %c0_i32_32 = arith.constant 0 : i32
    %c0_i32_33 = arith.constant 0 : i32
    %13 = tpu.memref_slice %arg1[%c1_i32_30, %c0_i32_31, %c0_i32_32, %c0_i32_33] : memref<2x4x16x16xf32, #tpu.memory_space<any>> -> memref<1x4x16x16xf32, #tpu.memory_space<any>>
    %14 = tpu.memref_slice %arg2[%c1_i32_25] : memref<2x!tpu.dma_semaphore, #tpu.memory_space<semaphore_mem>> -> memref<1x!tpu.dma_semaphore, #tpu.memory_space<semaphore_mem>>
    %15 = tpu.memref_squeeze %14 : memref<1x!tpu.dma_semaphore, #tpu.memory_space<semaphore_mem>> -> memref<!tpu.dma_semaphore, #tpu.memory_space<semaphore_mem>>
    tpu.wait_dma2 semaphore(%15 : memref<!tpu.dma_semaphore, #tpu.memory_space<semaphore_mem>>) src(%12 : memref<1x4x16x16xf32, #tpu.memory_space<any>>) dst(%13 : memref<1x4x16x16xf32, #tpu.memory_space<any>>)
    return
  }
}

module attributes {stable_mosaic.version = 11 : i64} {
  func.func @_vmem_copy_kernel(%arg0: i32, %arg1: memref<32x512xf32, #tpu.memory_space<vmem>>, %arg2: memref<32x512xf32, #tpu.memory_space<vmem>>) attributes {dimension_semantics = [#tpu.dimension_semantics<parallel>], iteration_bounds = array<i64: 1>, scalar_prefetch = 0 : i64, scratch_operands = 0 : i64, tpu.core_type = #tpu.core_type<tc>, window_params = [{transform_indices = @transform_0, window_bounds = array<i64: 32, 512>}, {transform_indices = @transform_1, window_bounds = array<i64: 32, 512>}]} {
    %c0 = arith.constant 0 : index
    %c0_0 = arith.constant 0 : index
    %0 = vector.load %arg1[%c0, %c0_0] : memref<32x512xf32, #tpu.memory_space<vmem>>, vector<32x512xf32>
    %c0_1 = arith.constant 0 : index
    %c0_2 = arith.constant 0 : index
    %1 = vector.load %arg2[%c0_1, %c0_2] : memref<32x512xf32, #tpu.memory_space<vmem>>, vector<32x512xf32>
    tpu.vector_store %arg2[%c0_1, %c0_2], %0 {strides = array<i32>} : memref<32x512xf32, #tpu.memory_space<vmem>>, vector<32x512xf32>,
    return
  }
  func.func @transform_0(%arg0: i32) -> (i32, i32) {
    %c0_i32 = arith.constant 0 : i32
    %c0_i32_0 = arith.constant 0 : i32
    return %arg0, %c0_i32 : i32, i32
  }
  func.func @transform_1(%arg0: i32) -> (i32, i32) {
    %c0_i32 = arith.constant 0 : i32
    %c0_i32_0 = arith.constant 0 : i32
    return %arg0, %c0_i32 : i32, i32
  }
}

</mosaic_0001>

<llo_original>
// kernel: tpu_custom_call.1
$region0: #{tpu_custom_call.1}
  #allocation0 [shape = 'u32[]', space=smem, size = 0x4, offset = 0x4, fixed_abs, tag = 'smem constant byte address 0x4 - core index']
  #allocation1 [shape = 'u32[144,128]{1,0:T(1,128)}', space=vmem, size = 0x12000, scoped, tag = 'internal scratch']
  %s0 = inlined_call_operand.hbm [shape: f32[32,512], index: 0, kind: input, shape index: {}]
  %s1 = inlined_call_operand.hbm [shape: f32[32,512], index: 1, kind: output, shape index: {}]
  %s2 = sld [smem:[#allocation0]]
  $region18: #{tpu_custom_call.1} parent=0
    _
  %s4 = ssub.s32 1, %s2
  %s5 = scalar_select 0, %s4, %s2
  $region1: #{tpu_custom_call.1} parent=0
    #allocation2 [shape = 'u8[65536]{0}', space=vmem, size = 0x10000, scoped, tag = 'input window, operand 0, single buffered']
    #allocation3 [shape = 's32[1]{0}', space=sflag, size = 0x4, scoped, tag = 'scoped memory for tpu_custom_call.1']
    #allocation4 [shape = 's32[1]{0}', space=sflag, size = 0x4, scoped, tag = 'scoped memory for tpu_custom_call.1']
    #allocation5 [shape = 'u8[65536]{0}', space=vmem, size = 0x10000, scoped, tag = 'output window, operand 0, single buffered']
    %6 = vsyncpa [#allocation3], 0
    %7 = vsyncpa [#allocation4], 0
    // Predicated region
    $region2: #{tpu_custom_call.1} parent=1 // pred_check
      _
    $region3: #{tpu_custom_call.1} parent=1 // pred_check_branch
      %9 = sbr.rel (0) target = $region5
    $region4: #{tpu_custom_call.1} parent=1 // pred_region
      %s11 = ssub.s32 2048, 2048
      %12 = vsyncadd [#allocation3], %s11
      %s13 = sshll.u32 [#allocation2], 4
      %s14 = int_to_ptr.vmem [resolvable:$true] %s13
      %19 = dma.hbm_to_vmem [thread:$0]  %s0, 2048, %s14, [#allocation3], 512, 512, 32
    $region5: #{tpu_custom_call.1} parent=1 // pred_fallthru
      _
    // Predicated region
    $region6: #{tpu_custom_call.1} parent=1 // pred_check
      _
    $region7: #{tpu_custom_call.1} parent=1 // pred_check_branch
      %21 = sbr.rel (0) target = $region9
    $region8: #{tpu_custom_call.1} parent=1 // pred_region
      %22 = dma.done [#allocation3], 2048
    $region9: #{tpu_custom_call.1} parent=1 // pred_fallthru
      _
    %v23 = vld [vmem:[#allocation2] sm:$0xff]
    %v24 = vld [vmem:[#allocation2 + $0x8] sm:$0xff]
    %v25 = vld [vmem:[#allocation2 + $0x10] sm:$0xff]
    %v26 = vld [vmem:[#allocation2 + $0x18] sm:$0xff]
    %v27 = vld [vmem:[#allocation2 + $0x20] sm:$0xff]
    %v28 = vld [vmem:[#allocation2 + $0x28] sm:$0xff]
    %v29 = vld [vmem:[#allocation2 + $0x30] sm:$0xff]
    %v30 = vld [vmem:[#allocation2 + $0x38] sm:$0xff]
    %v31 = vld [vmem:[#allocation2 + $0x40] sm:$0xff]
    %v32 = vld [vmem:[#allocation2 + $0x48] sm:$0xff]
    %v33 = vld [vmem:[#allocation2 + $0x50] sm:$0xff]
    %v34 = vld [vmem:[#allocation2 + $0x58] sm:$0xff]
    %v35 = vld [vmem:[#allocation2 + $0x60] sm:$0xff]
    %v36 = vld [vmem:[#allocation2 + $0x68] sm:$0xff]
    %v37 = vld [vmem:[#allocation2 + $0x70] sm:$0xff]
    %v38 = vld [vmem:[#allocation2 + $0x78] sm:$0xff]
    %39 = vst [vmem:[#allocation5] sm:$0xff] %v23
    %40 = vst [vmem:[#allocation5 + $0x8] sm:$0xff] %v24
    %41 = vst [vmem:[#allocation5 + $0x10] sm:$0xff] %v25
    %42 = vst [vmem:[#allocation5 + $0x18] sm:$0xff] %v26
    %43 = vst [vmem:[#allocation5 + $0x20] sm:$0xff] %v27
    %44 = vst [vmem:[#allocation5 + $0x28] sm:$0xff] %v28
    %45 = vst [vmem:[#allocation5 + $0x30] sm:$0xff] %v29
    %46 = vst [vmem:[#allocation5 + $0x38] sm:$0xff] %v30
    %47 = vst [vmem:[#allocation5 + $0x40] sm:$0xff] %v31
    %48 = vst [vmem:[#allocation5 + $0x48] sm:$0xff] %v32
    %49 = vst [vmem:[#allocation5 + $0x50] sm:$0xff] %v33
    %50 = vst [vmem:[#allocation5 + $0x58] sm:$0xff] %v34
    %51 = vst [vmem:[#allocation5 + $0x60] sm:$0xff] %v35
    %52 = vst [vmem:[#allocation5 + $0x68] sm:$0xff] %v36
    %53 = vst [vmem:[#allocation5 + $0x70] sm:$0xff] %v37
    %54 = vst [vmem:[#allocation5 + $0x78] sm:$0xff] %v38
    // Predicated region
    $region10: #{tpu_custom_call.1} parent=1 // pred_check
      _
    $region11: #{tpu_custom_call.1} parent=1 // pred_check_branch
      %56 = sbr.rel (0) target = $region13
    $region12: #{tpu_custom_call.1} parent=1 // pred_region
      %s58 = ssub.s32 2048, 2048
      %59 = vsyncadd [#allocation4], %s58
      %s60 = sshll.u32 [#allocation5], 4
      %s61 = int_to_ptr.vmem [resolvable:$true] %s60
      %66 = dma.vmem_to_hbm [thread:$0]  %s61, 2048, %s1, [#allocation4], 512, 512, 32
    $region13: #{tpu_custom_call.1} parent=1 // pred_fallthru
      _
    // Predicated region
    $region14: #{tpu_custom_call.1} parent=1 // pred_check
      _
    $region15: #{tpu_custom_call.1} parent=1 // pred_check_branch
      %68 = sbr.rel (0) target = $region17
    $region16: #{tpu_custom_call.1} parent=1 // pred_region
      %69 = dma.done [#allocation4], 2048
    $region17: #{tpu_custom_call.1} parent=1 // pred_fallthru
      _
    %70 = vsyncpa [#allocation3], 1
    %71 = vsyncpa [#allocation4], 1

</llo_original>
